<compile_context>
chip_gen: v6e
topology: v6e:2x2x1
jax: 0.10.0
libtpu: 0.0.40
codegen_flags: <defaults>
</compile_context>

<pallas_src>
import jax
import jax.numpy as jnp
import numpy as np
from jax import lax
from jax.experimental import pallas as pl
from jax.experimental.pallas import tpu as pltpu

IGNORE_INDEX = -100.0


def _round_up(x, m):
    return ((x + m - 1) // m) * m


def _round_down(x, m):
    return (x // m) * m


def _vmem_budget_bytes():
    """Usable VMEM budget for this kernel, clamped to the device generation."""
    cap = 64 << 20  # conservative default (v7x physical VMEM) if query fails
    try:
        info = pltpu.get_tpu_info()
        cap = int(getattr(info, "vmem_capacity_bytes", cap) or cap)
    except Exception:
        pass
    # Leave headroom for compiler-internal scratch; never request > 100 MiB.
    return int(min(cap * 3 // 4, 100 << 20))


def _verifier_kernel(scalars_ref, x_ref, w_ref, lab_ref, scores_ref, lpart_ref):
    """One token tile of the fused verifier head.

    scalars_ref: (2,)        SMEM  [gain, bias * sum(w)]
    x_ref:       (TM, H)     VMEM  last-hidden tile (bf16/f32)
    w_ref:       (1, H)      VMEM  vscore_head weight row (hidden dtype)
    lab_ref:     (1, 1, TM)  VMEM  v_labels tile (f32, -100 == ignore), lane-dense
    scores_ref:  (1, 1, TM)  VMEM  output v_scores tile (f32), lane-dense
    lpart_ref:   (1, 8, 128) VMEM  per-tile partial masked-SSE (scalar splat)
    """
    gain = scalars_ref[0]
    bias_wsum = scalars_ref[1]          # bias * sum(w), folded affine offset

    # (gain*h + bias) @ w  ==  gain * (h @ w) + bias*sum(w).
    # Contract the last dims of (1,H) x (TM,H) on the MXU (flash-style q.k^T
    # pattern, bf16 in / f32 accumulate) -> score row is lane-dense (1, TM).
    raw = lax.dot_general(
        w_ref[...], x_ref[...],
        dimension_numbers=(((1,), (1,)), ((), ())),
        preferred_element_type=jnp.float32)               # (1, TM) f32
    s = gain * raw + bias_wsum                            # (1, TM) f32
    scores_ref[...] = s[None].astype(scores_ref.dtype)    # (1, 1, TM)

    # TODO(synk): nn.Dropout(p=0.2) is identity in eval mode; training-mode
    # dropout would mask with pltpu.prng_seed + pltpu.prng_random_bits.

    # mse_loss_with_mask partial: zero ignored positions, sum of squared error.
    lab = lab_ref[...]                                     # (1, 1, TM)
    keep = lab != IGNORE_INDEX
    d = jnp.where(keep, s[None] - lab, 0.0)
    lpart_ref[...] = jnp.broadcast_to(jnp.sum(d * d), lpart_ref.shape)


def verifier_head(last_hidden, head_w, gain, bias, v_labels, *, token_block=None):
    """Fused transform + vscore_head + masked-MSE, tiled over the token axis.

    last_hidden: (B, S, H)  bf16/f32  backbone last hidden states
    head_w:      (H,)       f32       vscore_head.weight (bias=False)
    gain, bias:  (1,)       f32
    v_labels:    (B, S)     f32       (-100 == ignore)
    token_block: optional override of the token tile (testing only; the
                 default derives the tile from the device VMEM budget).
    returns: v_scores (B, S, 1) f32, loss scalar f32
    """
    B, S, H = last_hidden.shape
    n = B * S
    hid_dtype = last_hidden.dtype
    hid_bytes = jnp.dtype(hid_dtype).itemsize

    vmem_budget = _vmem_budget_bytes()

    # ---- token tile: ~8 MiB of hidden bytes per step (amortizes per-step
    # overhead), capped so double-buffered tiles fit the device VMEM budget;
    # multiple of 128 for lane-dense label/score blocks and bf16 packing.
    n_lane = _round_up(max(n, 1), 128)
    # Per-token double-buffered VMEM: hidden row + sublane-padded label/score.
    per_tok = H * hid_bytes + 2 * (8 * 4)
    fixed = 2 * (8 * H * hid_bytes) + 2 * (8 * 128 * 4) + (2 << 20)
    tm_cap = max(128, _round_down(max(vmem_budget - fixed, 0) // (2 * per_tok), 128))
    if token_block is not None:
        tm = _round_up(int(token_block), 128)
    else:
        tm = max(128, _round_down((8 << 20) // (H * hid_bytes), 128))
    tm = int(min(tm, tm_cap, n_lane))

    n_pad = _round_up(n, tm)
    grid_n = n_pad // tm

    # ---- operands
    x2d = last_hidden.reshape(n, H)
    lab1d = v_labels.astype(jnp.float32).reshape(n)
    if n_pad != n:
        x2d = jnp.pad(x2d, ((0, n_pad - n), (0, 0)))
        lab1d = jnp.pad(lab1d, (0, n_pad - n),
                        constant_values=IGNORE_INDEX)  # padded rows excluded
    lab3 = lab1d.reshape(grid_n, 1, tm)                # lane-dense label tiles

    w2d = head_w.astype(hid_dtype).reshape(1, H)       # bf16 row for the MXU
    gain_s = gain.reshape(()).astype(jnp.float32)
    bias_wsum = (bias.reshape(()).astype(jnp.float32)
                 * jnp.sum(head_w.astype(jnp.float32)))
    scalars = jnp.stack([gain_s, bias_wsum])

    vmem_need = 2 * tm * per_tok + fixed
    vmem_limit = int(min(max(vmem_need, 8 << 20), vmem_budget))

    cost = pl.CostEstimate(
        flops=2 * n_pad * H,
        transcendentals=0,
        bytes_accessed=(n_pad * H * hid_bytes + n_pad * 8
                        + grid_n * 8 * 128 * 4 + H * hid_bytes),
    )

    scores3, parts = pl.pallas_call(
        _verifier_kernel,
        out_shape=(
            jax.ShapeDtypeStruct((grid_n, 1, tm), jnp.float32),   # v_scores
            jax.ShapeDtypeStruct((grid_n, 8, 128), jnp.float32),  # partial loss
        ),
        grid=(grid_n,),
        in_specs=[
            pl.BlockSpec(memory_space=pltpu.MemorySpace.SMEM),  # [gain, b*sum(w)]
            pl.BlockSpec((tm, H), lambda i: (i, 0)),            # hidden tile
            pl.BlockSpec((1, H), lambda i: (0, 0)),             # weight row (const)
            pl.BlockSpec((1, 1, tm), lambda i: (i, 0, 0)),      # labels tile
        ],
        out_specs=(
            pl.BlockSpec((1, 1, tm), lambda i: (i, 0, 0)),      # v_scores tile
            pl.BlockSpec((1, 8, 128), lambda i: (i, 0, 0)),     # per-tile loss
        ),
        compiler_params=pltpu.CompilerParams(
            # No cross-step state -> token axis shards across v7x's two TCs.
            dimension_semantics=("parallel",),
            vmem_limit_bytes=vmem_limit,
        ),
        cost_estimate=cost,
    )(scalars, x2d, w2d, lab3)

    v_scores = scores3.reshape(n_pad)[:n].reshape(B, S, 1)
    # Padded tiles contribute 0 (their labels are IGNORE_INDEX).
    loss = jnp.sum(parts[:, 0, 0]) / B
    return v_scores, loss


def backbone_forward(input_ids, embed_table, w_backbone):
    """Frozen-backbone stub (plain JAX glue): embedding + linear + tanh -> bf16."""
    # TODO(synk): the real frozen LLM backbone forward is out of scope here.
    h0 = embed_table[input_ids]                        # (B, S, H)
    return jnp.tanh(h0 @ w_backbone).astype(jnp.bfloat16)


if __name__ == "__main__":
    B, S, H, V = 2, 128, 256, 512

    key = jax.random.PRNGKey(0)
    k_emb, k_wb, k_ids, k_gain, k_bias, k_lab = jax.random.split(key, 6)

    # Deterministic synthetic "backbone" parameters (frozen).
    embed_table = 0.02 * jax.random.normal(k_emb, (V, H), jnp.float32)
    w_backbone = 0.1 * jax.random.normal(k_wb, (H, H), jnp.float32)

    # Verifier parameters: init_head_params() -> mean of output embeddings
    # (tied to input embeddings here); gain/bias ~ randn(1).
    head_w = embed_table.mean(axis=0)                  # (H,)
    gain = jax.random.normal(k_gain, (1,), jnp.float32)
    bias = jax.random.normal(k_bias, (1,), jnp.float32)

    # Inputs.
    input_ids = jax.random.randint(k_ids, (B, S), 0, V)
    v_labels_raw = jax.random.bernoulli(k_lab, 0.5, (B, S)).astype(jnp.float32)
    ignore_mask = (jnp.arange(B * S).reshape(B, S) % 3) == 0
    v_labels = jnp.where(ignore_mask, IGNORE_INDEX, v_labels_raw)

    # Forward pass (labels=None -> llm_loss is None -> loss == v_loss).
    last_hidden = backbone_forward(input_ids, embed_table, w_backbone)  # bf16

    # Plain-JAX reference (same bf16 hidden, f32 math).
    h32 = last_hidden.astype(jnp.float32)
    w32 = head_w.astype(jnp.float32)
    raw = jnp.sum(h32 * w32[None, None, :], axis=-1)                  # (B, S)
    ref_scores = (gain[0] * raw + bias[0] * jnp.sum(w32))[..., None]  # (B, S, 1)
    keep = v_labels != IGNORE_INDEX
    diff = jnp.where(keep, ref_scores[..., 0] - v_labels, 0.0)
    ref_loss = jnp.sum(diff * diff) / B

    # 1) Default path: VMEM-budget-derived tile (single grid step at demo size).
    v_scores, loss = verifier_head(last_hidden, head_w, gain, bias, v_labels)
    jax.block_until_ready((v_scores, loss))
    assert v_scores.shape == (B, S, 1)
    assert np.allclose(np.asarray(v_scores), np.asarray(ref_scores),
                       atol=1e-4, rtol=1e-4)
    assert np.allclose(float(loss), float(ref_loss), rtol=1e-3, atol=1e-3)

    # 2) Forced small tile to exercise the multi-step grid / partial-loss path
    #    (correctness check only; production path auto-sizes the tile).
    v_scores2, loss2 = verifier_head(last_hidden, head_w, gain, bias, v_labels,
                                     token_block=128)
    jax.block_until_ready((v_scores2, loss2))
    assert np.allclose(np.asarray(v_scores2), np.asarray(ref_scores),
                       atol=1e-4, rtol=1e-4)
    assert np.allclose(float(loss2), float(ref_loss), rtol=1e-3, atol=1e-3)

    print("KERNEL_OK")
</pallas_src>

<mosaic_0001>
module attributes {stable_mosaic.version = 11 : i64} {
  func.func @_verifier_kernel(%arg0: i32, %arg1: memref<2xf32, #tpu.memory_space<smem>>, %arg2: memref<256x256xbf16, #tpu.memory_space<vmem>>, %arg3: memref<1x256xbf16, #tpu.memory_space<vmem>>, %arg4: memref<1x1x256xf32, #tpu.memory_space<vmem>>, %arg5: memref<1x1x256xf32, #tpu.memory_space<vmem>>, %arg6: memref<1x8x128xf32, #tpu.memory_space<vmem>>) attributes {dimension_semantics = [#tpu.dimension_semantics<parallel>], iteration_bounds = array<i64: 1>, scalar_prefetch = 0 : i64, scratch_operands = 0 : i64, tpu.core_type = #tpu.core_type<tc>, window_params = [{transform_indices = @transform_0, window_bounds = array<i64: 2>}, {transform_indices = @transform_1, window_bounds = array<i64: 256, 256>}, {pipeline_mode = #tpu.pipeline_mode<synchronous>, transform_indices = @transform_2, window_bounds = array<i64: 1, 256>}, {transform_indices = @transform_3, window_bounds = array<i64: 1, 1, 256>}, {transform_indices = @transform_4, window_bounds = array<i64: 1, 1, 256>}, {transform_indices = @transform_5, window_bounds = array<i64: 1, 8, 128>}]} {
    %c0 = arith.constant 0 : index
    %0 = memref.load %arg1[%c0] : memref<2xf32, #tpu.memory_space<smem>>
    %c1 = arith.constant 1 : index
    %1 = memref.load %arg1[%c1] : memref<2xf32, #tpu.memory_space<smem>>
    %c0_0 = arith.constant 0 : index
    %c0_1 = arith.constant 0 : index
    %2 = vector.load %arg3[%c0_0, %c0_1] : memref<1x256xbf16, #tpu.memory_space<vmem>>, vector<1x256xbf16>
    %c0_2 = arith.constant 0 : index
    %c0_3 = arith.constant 0 : index
    %3 = vector.load %arg2[%c0_2, %c0_3] : memref<256x256xbf16, #tpu.memory_space<vmem>>, vector<256x256xbf16>
    %cst = arith.constant dense<0.000000e+00> : vector<1x256xf32>
    %4 = tpu.matmul %2, %3, %cst {dimension_numbers = #tpu.dot_dimension_numbers<[1], [1], [0], [0], [0, 0, 1, 0], [], []>} : vector<1x256xbf16>, vector<256x256xbf16>, vector<1x256xf32> -> vector<1x256xf32>
    %5 = vector.broadcast %0 : f32 to vector<1x256xf32>
    %6 = arith.mulf %5, %4 : vector<1x256xf32>
    %7 = vector.broadcast %1 : f32 to vector<1x256xf32>
    %8 = arith.addf %6, %7 : vector<1x256xf32>
    %9 = vector.shape_cast %8 : vector<1x256xf32> to vector<1x1x256xf32>
    %c0_4 = arith.constant 0 : index
    %c0_5 = arith.constant 0 : index
    %c0_6 = arith.constant 0 : index
    %10 = vector.load %arg5[%c0_4, %c0_5, %c0_6] : memref<1x1x256xf32, #tpu.memory_space<vmem>>, vector<1x1x256xf32>
    tpu.vector_store %arg5[%c0_4, %c0_5, %c0_6], %9 {strides = array<i32>} : memref<1x1x256xf32, #tpu.memory_space<vmem>>, vector<1x1x256xf32>,
    %c0_7 = arith.constant 0 : index
    %c0_8 = arith.constant 0 : index
    %c0_9 = arith.constant 0 : index
    %11 = vector.load %arg4[%c0_7, %c0_8, %c0_9] : memref<1x1x256xf32, #tpu.memory_space<vmem>>, vector<1x1x256xf32>
    %cst_10 = arith.constant -1.000000e+02 : f32
    %12 = vector.broadcast %cst_10 : f32 to vector<1x1x256xf32>
    %13 = arith.cmpf one, %11, %12 : vector<1x1x256xf32>
    %14 = vector.shape_cast %8 : vector<1x256xf32> to vector<1x1x256xf32>
    %15 = arith.subf %14, %11 : vector<1x1x256xf32>
    %cst_11 = arith.constant 0.000000e+00 : f32
    %16 = vector.broadcast %cst_11 : f32 to vector<1x1x256xf32>
    %17 = arith.select %13, %15, %16 : vector<1x1x256xi1>, vector<1x1x256xf32>
    %18 = arith.mulf %17, %17 : vector<1x1x256xf32>
    %19 = vector.shape_cast %18 : vector<1x1x256xf32> to vector<1x1x1x256xf32>
    %cst_12 = arith.constant dense<0.000000e+00> : vector<1xf32>
    %20 = vector.multi_reduction <add>, %19, %cst_12 [1, 2, 3] : vector<1x1x1x256xf32> to vector<1xf32>
    %21 = vector.shape_cast %20 : vector<1xf32> to vector<1x1x1x1xf32>
    %22 = vector.extract %21[0, 0, 0, 0] : f32 from vector<1x1x1x1xf32>
    %23 = vector.broadcast %22 : f32 to vector<1x8x128xf32>
    %c0_13 = arith.constant 0 : index
    %c0_14 = arith.constant 0 : index
    %c0_15 = arith.constant 0 : index
    %24 = vector.load %arg6[%c0_13, %c0_14, %c0_15] : memref<1x8x128xf32, #tpu.memory_space<vmem>>, vector<1x8x128xf32>
    tpu.vector_store %arg6[%c0_13, %c0_14, %c0_15], %23 {strides = array<i32>} : memref<1x8x128xf32, #tpu.memory_space<vmem>>, vector<1x8x128xf32>,
    return
  }
  func.func @transform_0(%arg0: i32) -> i32 {
    %c0_i32 = arith.constant 0 : i32
    %c0_i32_0 = arith.constant 0 : i32
    return %c0_i32 : i32
  }
  func.func @transform_1(%arg0: i32) -> (i32, i32) {
    %c0_i32 = arith.constant 0 : i32
    %c0_i32_0 = arith.constant 0 : i32
    return %arg0, %c0_i32 : i32, i32
  }
  func.func @transform_2(%arg0: i32) -> (i32, i32) {
    %c0_i32 = arith.constant 0 : i32
    %c0_i32_0 = arith.constant 0 : i32
    %c0_i32_1 = arith.constant 0 : i32
    return %c0_i32, %c0_i32_0 : i32, i32
  }
  func.func @transform_3(%arg0: i32) -> (i32, i32, i32) {
    %c0_i32 = arith.constant 0 : i32
    %c0_i32_0 = arith.constant 0 : i32
    %c0_i32_1 = arith.constant 0 : i32
    return %arg0, %c0_i32, %c0_i32_0 : i32, i32, i32
  }
  func.func @transform_4(%arg0: i32) -> (i32, i32, i32) {
    %c0_i32 = arith.constant 0 : i32
    %c0_i32_0 = arith.constant 0 : i32
    %c0_i32_1 = arith.constant 0 : i32
    return %arg0, %c0_i32, %c0_i32_0 : i32, i32, i32
  }
  func.func @transform_5(%arg0: i32) -> (i32, i32, i32) {
    %c0_i32 = arith.constant 0 : i32
    %c0_i32_0 = arith.constant 0 : i32
    %c0_i32_1 = arith.constant 0 : i32
    return %arg0, %c0_i32, %c0_i32_0 : i32, i32, i32
  }
}

</mosaic_0001>

<llo_original>
// kernel: tpu_custom_call.1
$region0: #{tpu_custom_call.1}
  #allocation0 [shape = 'u32[]', space=smem, size = 0x4, offset = 0x4, fixed_abs, tag = 'smem constant byte address 0x4 - core index']
  #allocation1 [shape = 'u32[144,128]{1,0:T(1,128)}', space=vmem, size = 0x12000, scoped, tag = 'internal scratch']
  %s0 = inlined_call_operand.hbm [shape: f32[2], index: 0, kind: input, shape index: {}]
  %s1 = inlined_call_operand.hbm [shape: bf16[256,256], index: 1, kind: input, shape index: {}]
  %s2 = inlined_call_operand.vmem [shape: bf16[1,256], index: 2, kind: input, shape index: {}]
  %s3 = inlined_call_operand.vmem [shape: f32[1,1,256], index: 3, kind: input, shape index: {}]
  %s4 = inlined_call_operand.hbm [shape: f32[1,1,256], index: 4, kind: output, shape index: {0}]
  %s5 = inlined_call_operand.hbm [shape: f32[1,8,128], index: 5, kind: output, shape index: {1}]
  %6 = xla_tuple %s4, %s5
  %s7 = sld [smem:[#allocation0]]
  $region42: #{tpu_custom_call.1} parent=0
    _
  %s9 = ssub.s32 1, %s7
  %s10 = scalar_select 0, %s9, %s7
  $region1: #{tpu_custom_call.1} parent=0
    #allocation2 [shape = 'u8[512]{0}', space=smem, size = 0x200, scoped, tag = 'input window, operand 0, single buffered']
    #allocation3 [shape = 's32[1]{0}', space=sflag, size = 0x4, scoped, tag = 'scoped memory for tpu_custom_call.1']
    #allocation4 [shape = 's32[1]{0}', space=sflag, size = 0x4, scoped, tag = 'scoped memory for tpu_custom_call.1']
    #allocation5 [shape = 's32[1]{0}', space=sflag, size = 0x4, scoped, tag = 'scoped memory for tpu_custom_call.1']
    #allocation6 [shape = 'u8[131072]{0}', space=vmem, size = 0x20000, scoped, tag = 'input window, operand 1, single buffered']
    #allocation7 [shape = 'u8[1024]{0}', space=vmem, size = 0x400, scoped, tag = 'output window, operand 0, single buffered']
    #allocation8 [shape = 'u8[4096]{0}', space=vmem, size = 0x1000, scoped, tag = 'output window, operand 1, single buffered']
    #allocation9 [shape = 's32[1]{0}', space=sflag, size = 0x4, scoped, tag = 'scoped memory for tpu_custom_call.1']
    %11 = vsyncpa [#allocation5], 0
    %12 = vsyncpa [#allocation3], 0
    %13 = vsyncpa [#allocation4], 0
    %14 = vsyncpa [#allocation9], 0
    // Predicated region
    $region2: #{tpu_custom_call.1} parent=1 // pred_check
      _
    $region3: #{tpu_custom_call.1} parent=1 // pred_check_branch
      %16 = sbr.rel (0) target = $region5
    $region4: #{tpu_custom_call.1} parent=1 // pred_region
      %s18 = ssub.s32 16, 16
      %19 = vsyncadd [#allocation5], %s18
      %22 = dma.hbm_to_smem %s0, 16, [#allocation2], [#allocation5]
    $region5: #{tpu_custom_call.1} parent=1 // pred_fallthru
      _
    // Predicated region
    $region6: #{tpu_custom_call.1} parent=1 // pred_check
      _
    $region7: #{tpu_custom_call.1} parent=1 // pred_check_branch
      %24 = sbr.rel (0) target = $region9
    $region8: #{tpu_custom_call.1} parent=1 // pred_region
      %s26 = ssub.s32 4096, 4096
      %27 = vsyncadd [#allocation3], %s26
      %s28 = sshll.u32 [#allocation6], 4
      %s29 = int_to_ptr.vmem [resolvable:$true] %s28
      %34 = dma.hbm_to_vmem [thread:$0]  %s1, 4096, %s29, [#allocation3], 128, 128, 8
    $region9: #{tpu_custom_call.1} parent=1 // pred_fallthru
      _
    // Predicated region
    $region10: #{tpu_custom_call.1} parent=1 // pred_check
      _
    $region11: #{tpu_custom_call.1} parent=1 // pred_check_branch
      %36 = sbr.rel (0) target = $region13
    $region12: #{tpu_custom_call.1} parent=1 // pred_region
      _
    $region13: #{tpu_custom_call.1} parent=1 // pred_fallthru
      _
    // Predicated region
    $region14: #{tpu_custom_call.1} parent=1 // pred_check
      _
    $region15: #{tpu_custom_call.1} parent=1 // pred_check_branch
      %38 = sbr.rel (0) target = $region17
    $region16: #{tpu_custom_call.1} parent=1 // pred_region
      _
    $region17: #{tpu_custom_call.1} parent=1 // pred_fallthru
      _
    // Predicated region
    $region18: #{tpu_custom_call.1} parent=1 // pred_check
      _
    $region19: #{tpu_custom_call.1} parent=1 // pred_check_branch
      %40 = sbr.rel (0) target = $region21
    $region20: #{tpu_custom_call.1} parent=1 // pred_region
      %41 = dma.done [#allocation5], 16
    $region21: #{tpu_custom_call.1} parent=1 // pred_fallthru
      _
    // Predicated region
    $region22: #{tpu_custom_call.1} parent=1 // pred_check
      _
    $region23: #{tpu_custom_call.1} parent=1 // pred_check_branch
      %43 = sbr.rel (0) target = $region25
    $region24: #{tpu_custom_call.1} parent=1 // pred_region
      %44 = dma.done [#allocation3], 4096
    $region25: #{tpu_custom_call.1} parent=1 // pred_fallthru
      _
    %45 = sfence
    %s46 = sld [smem:[#allocation2]]
    %s47 = sld [smem:[#allocation2 + $0x1]]
    %v48 = vld [vmem:[%s2] sm:$0x3]
    %v49 = vld [vmem:[#allocation6] sm:$0xff]
    %v50 = vld [vmem:[#allocation6 + $0x8] sm:$0xff]
    %v51 = vld [vmem:[#allocation6 + $0x10] sm:$0xff]
    %v52 = vld [vmem:[#allocation6 + $0x18] sm:$0xff]
    %v53 = vld [vmem:[#allocation6 + $0x20] sm:$0xff]
    %v54 = vld [vmem:[#allocation6 + $0x28] sm:$0xff]
    %v55 = vld [vmem:[#allocation6 + $0x30] sm:$0xff]
    %v56 = vld [vmem:[#allocation6 + $0x38] sm:$0xff]
    %v57 = vld [vmem:[#allocation6 + $0x40] sm:$0xff]
    %v58 = vld [vmem:[#allocation6 + $0x48] sm:$0xff]
    %v59 = vld [vmem:[#allocation6 + $0x50] sm:$0xff]
    %v60 = vld [vmem:[#allocation6 + $0x58] sm:$0xff]
    %v61 = vld [vmem:[#allocation6 + $0x60] sm:$0xff]
    %v62 = vld [vmem:[#allocation6 + $0x68] sm:$0xff]
    %v63 = vld [vmem:[#allocation6 + $0x70] sm:$0xff]
    %v64 = vld [vmem:[#allocation6 + $0x78] sm:$0xff]
    %v65 = vld [vmem:[#allocation6 + $0x80] sm:$0xff]
    %v66 = vld [vmem:[#allocation6 + $0x88] sm:$0xff]
    %v67 = vld [vmem:[#allocation6 + $0x90] sm:$0xff]
    %v68 = vld [vmem:[#allocation6 + $0x98] sm:$0xff]
    %v69 = vld [vmem:[#allocation6 + $0xa0] sm:$0xff]
    %v70 = vld [vmem:[#allocation6 + $0xa8] sm:$0xff]
    %v71 = vld [vmem:[#allocation6 + $0xb0] sm:$0xff]
    %v72 = vld [vmem:[#allocation6 + $0xb8] sm:$0xff]
    %v73 = vld [vmem:[#allocation6 + $0xc0] sm:$0xff]
    %v74 = vld [vmem:[#allocation6 + $0xc8] sm:$0xff]
    %v75 = vld [vmem:[#allocation6 + $0xd0] sm:$0xff]
    %v76 = vld [vmem:[#allocation6 + $0xd8] sm:$0xff]
    %v77 = vld [vmem:[#allocation6 + $0xe0] sm:$0xff]
    %v78 = vld [vmem:[#allocation6 + $0xe8] sm:$0xff]
    %v79 = vld [vmem:[#allocation6 + $0xf0] sm:$0xff]
    %v80 = vld [vmem:[#allocation6 + $0xf8] sm:$0xff]
    %v83 = vunpack.c.l.s4 1966171168
    %v84 = vunpack.c.0.s8 %v83
    %v85 = vlaneseq
    %v86 = vshrl.u32 %v85, 7
    %v87 = vsub.s32 %v84, %v86
    %v88 = vrot.slane %v48, %v87
    %v89 = vcombine.high %v88, %v88
    %v91 = vunpack.c.l.s4 1966171168
    %v92 = vunpack.c.0.s8 %v91
    %v93 = vlaneseq
    %v94 = vshrl.u32 %v93, 7
    %v95 = vsub.s32 %v92, %v94
    %v96 = vrot.slane %v88, %v95
    %v98 = vunpack.c.l.s4 1966171168
    %v99 = vunpack.c.0.s8 %v98
    %v100 = vlaneseq
    %v101 = vshrl.u32 %v100, 7
    %v102 = vsub.s32 %v99, %v101
    %v103 = vrot.slane %v89, %v102
    %v138 = vunpack.c.l.b16 %v49
    %v139 = vunpack.c.h.b16 %v49
    %v140 = vunpack.c.l.b16 %v50
    %v141 = vunpack.c.h.b16 %v50
    %v142 = vunpack.c.l.b16 %v51
    %v143 = vunpack.c.h.b16 %v51
    %v144 = vunpack.c.l.b16 %v52
    %v145 = vunpack.c.h.b16 %v52
    %v146 = vunpack.c.l.b16 %v53
    %v147 = vunpack.c.h.b16 %v53
    %v148 = vunpack.c.l.b16 %v54
    %v149 = vunpack.c.h.b16 %v54
    %v150 = vunpack.c.l.b16 %v55
    %v151 = vunpack.c.h.b16 %v55
    %v152 = vunpack.c.l.b16 %v56
    %v153 = vunpack.c.h.b16 %v56
    %v154 = vunpack.c.l.b16 %v57
    %v155 = vunpack.c.h.b16 %v57
    %v156 = vunpack.c.l.b16 %v58
    %v157 = vunpack.c.h.b16 %v58
    %v158 = vunpack.c.l.b16 %v59
    %v159 = vunpack.c.h.b16 %v59
    %v160 = vunpack.c.l.b16 %v60
    %v161 = vunpack.c.h.b16 %v60
    %v162 = vunpack.c.l.b16 %v61
    %v163 = vunpack.c.h.b16 %v61
    %v164 = vunpack.c.l.b16 %v62
    %v165 = vunpack.c.h.b16 %v62
    %v166 = vunpack.c.l.b16 %v63
    %v167 = vunpack.c.h.b16 %v63
    %v168 = vunpack.c.l.b16 %v64
    %v169 = vunpack.c.h.b16 %v64
    %v170 = vunpack.c.l.b16 %v65
    %v171 = vunpack.c.h.b16 %v65
    %v172 = vunpack.c.l.b16 %v66
    %v173 = vunpack.c.h.b16 %v66
    %v174 = vunpack.c.l.b16 %v67
    %v175 = vunpack.c.h.b16 %v67
    %v176 = vunpack.c.l.b16 %v68
    %v177 = vunpack.c.h.b16 %v68
    %v178 = vunpack.c.l.b16 %v69
    %v179 = vunpack.c.h.b16 %v69
    %v180 = vunpack.c.l.b16 %v70
    %v181 = vunpack.c.h.b16 %v70
    %v182 = vunpack.c.l.b16 %v71
    %v183 = vunpack.c.h.b16 %v71
    %v184 = vunpack.c.l.b16 %v72
    %v185 = vunpack.c.h.b16 %v72
    %v186 = vunpack.c.l.b16 %v73
    %v187 = vunpack.c.h.b16 %v73
    %v188 = vunpack.c.l.b16 %v74
    %v189 = vunpack.c.h.b16 %v74
    %v190 = vunpack.c.l.b16 %v75
    %v191 = vunpack.c.h.b16 %v75
    %v192 = vunpack.c.l.b16 %v76
    %v193 = vunpack.c.h.b16 %v76
    %v194 = vunpack.c.l.b16 %v77
    %v195 = vunpack.c.h.b16 %v77
    %v196 = vunpack.c.l.b16 %v78
    %v197 = vunpack.c.h.b16 %v78
    %v198 = vunpack.c.l.b16 %v79
    %v199 = vunpack.c.h.b16 %v79
    %v200 = vunpack.c.l.b16 %v80
    %v201 = vunpack.c.h.b16 %v80
    %v202 = vpack.c.b16 %v140, %v138
    %v203 = vpack.c.b16 %v141, %v139
    %v204 = vpack.c.b16 %v144, %v142
    %v205 = vpack.c.b16 %v145, %v143
    %v206 = vpack.c.b16 %v148, %v146
    %v207 = vpack.c.b16 %v149, %v147
    %v208 = vpack.c.b16 %v152, %v150
    %v209 = vpack.c.b16 %v153, %v151
    %v210 = vpack.c.b16 %v156, %v154
    %v211 = vpack.c.b16 %v157, %v155
    %v212 = vpack.c.b16 %v160, %v158
    %v213 = vpack.c.b16 %v161, %v159
    %v214 = vpack.c.b16 %v164, %v162
    %v215 = vpack.c.b16 %v165, %v163
    %v216 = vpack.c.b16 %v168, %v166
    %v217 = vpack.c.b16 %v169, %v167
    %v218 = vpack.c.b16 %v172, %v170
    %v219 = vpack.c.b16 %v173, %v171
    %v220 = vpack.c.b16 %v176, %v174
    %v221 = vpack.c.b16 %v177, %v175
    %v222 = vpack.c.b16 %v180, %v178
    %v223 = vpack.c.b16 %v181, %v179
    %v224 = vpack.c.b16 %v184, %v182
    %v225 = vpack.c.b16 %v185, %v183
    %v226 = vpack.c.b16 %v188, %v186
    %v227 = vpack.c.b16 %v189, %v187
    %v228 = vpack.c.b16 %v192, %v190
    %v229 = vpack.c.b16 %v193, %v191
    %v230 = vpack.c.b16 %v196, %v194
    %v231 = vpack.c.b16 %v197, %v195
    %v232 = vpack.c.b16 %v200, %v198
    %v233 = vpack.c.b16 %v201, %v199
    %266 = vmatprep.subr.bf16.mxu0 %v217
    %267 = vmatpush1.bf16.xpose.msra.mxu0 %v216
    %268 = vmatprep.subr.bf16.mxu0 %v215
    %269 = vmatpush1.bf16.xpose.msra.mxu0 %v214
    %270 = vmatprep.subr.bf16.mxu0 %v213
    %271 = vmatpush1.bf16.xpose.msra.mxu0 %v212
    %272 = vmatprep.subr.bf16.mxu0 %v211
    %273 = vmatpush1.bf16.xpose.msra.mxu0 %v210
    %274 = vmatprep.subr.bf16.mxu0 %v209
    %275 = vmatpush1.bf16.xpose.msra.mxu0 %v208
    %276 = vmatprep.subr.bf16.mxu0 %v207
    %277 = vmatpush1.bf16.xpose.msra.mxu0 %v206
    %278 = vmatprep.subr.bf16.mxu0 %v205
    %279 = vmatpush1.bf16.xpose.msra.mxu0 %v204
    %280 = vmatprep.subr.bf16.mxu0 %v203
    %281 = vmatpush1.bf16.xpose.msra.mxu0 %v202
    %282 = vmatprep.subr.bf16.mxu0 %v233
    %283 = vmatpush2.bf16.xpose.msra.mxu0 %v232
    %284 = vmatprep.subr.bf16.mxu0 %v231
    %285 = vmatpush2.bf16.xpose.msra.mxu0 %v230
    %286 = vmatprep.subr.bf16.mxu0 %v229
    %287 = vmatpush2.bf16.xpose.msra.mxu0 %v228
    %288 = vmatprep.subr.bf16.mxu0 %v227
    %289 = vmatpush2.bf16.xpose.msra.mxu0 %v226
    %290 = vmatprep.subr.bf16.mxu0 %v225
    %291 = vmatpush2.bf16.xpose.msra.mxu0 %v224
    %292 = vmatprep.subr.bf16.mxu0 %v223
    %293 = vmatpush2.bf16.xpose.msra.mxu0 %v222
    %294 = vmatprep.subr.bf16.mxu0 %v221
    %295 = vmatpush2.bf16.xpose.msra.mxu0 %v220
    %296 = vmatprep.subr.bf16.mxu0 %v219
    %297 = vmatpush2.bf16.xpose.msra.mxu0 %v218
    %298 = vmatprep.mubr.bf16.mxu0 %v103
    %299 = vmatmul.mubr.bf16.gmra.mxu0 %v96
    %v300 = vpop.f32.mrf.mxu0
    %v301 = vadd.f32 0.0, %v300
    %v302 = vpop.f32.mrf.mxu0
    %v303 = vadd.f32 0.0, %v302
    %v304 = vpop.f32.mrf.mxu0
    %v305 = vpop.f32.mrf.mxu0
    %306 = vdwg.mxu0
    %v307 = vstv %s46
    %v308 = vmul.f32 %v307, %v301
    %v309 = vmul.f32 %v307, %v303
    %v310 = vstv %s47
    %v311 = vadd.f32 %v308, %v310
    %v312 = vadd.f32 %v309, %v310
    %v315 = vcombine.low %v311, %v312
    %v317 = vunpack.c.l.s4 1966171168
    %v318 = vunpack.c.0.s8 %v317
    %v319 = vlaneseq
    %v320 = vshrl.u32 %v319, 7
    %v321 = vsub.s32 %v318, %v320
    %v322 = vrot.slane %v315, %v321
    %v324 = vunpack.c.l.s4 1966171168
    %v325 = vunpack.c.0.s8 %v324
    %v326 = vlaneseq
    %v327 = vshrl.u32 %v326, 7
    %v328 = vsub.s32 %v325, %v327
    %v329 = vrot.slane %v322, %v328
    %v331 = vlaneseq
    %vm332 = vcmp.ge.s32.totalorder %v331, 0
    %vm333 = vcmp.lt.s32.totalorder %v331, 256
    %vm334 = vmand %vm332, %vm333
    %335 = vst.msk [vmem:[#allocation7] sm:$0x3] %vm334, %v329
    %v336 = vld [vmem:[%s3] sm:$0x3]
    %vm337 = vcmp.ne.f32.partialorder %v336, -100.0
    %v339 = vlaneseq
    %v340 = vshrl.u32 %v339, 7
    %v341 = vsub.s32 0, %v340
    %v342 = vrot.slane %v336, %v341
    %v343 = vlaneseq
    %v344 = vshrl.u32 %v343, 7
    %v345 = vsub.s32 1, %v344
    %v346 = vrot.slane %v336, %v345
    %v349 = vsub.f32 %v311, %v342
    %v350 = vsub.f32 %v312, %v346
    %v353 = vcombine.low %v349, %v350
    %v355 = vunpack.c.l.s4 1966171168
    %v356 = vunpack.c.0.s8 %v355
    %v357 = vlaneseq
    %v358 = vshrl.u32 %v357, 7
    %v359 = vsub.s32 %v356, %v358
    %v360 = vrot.slane %v353, %v359
    %v362 = vunpack.c.l.s4 1966171168
    %v363 = vunpack.c.0.s8 %v362
    %v364 = vlaneseq
    %v365 = vshrl.u32 %v364, 7
    %v366 = vsub.s32 %v363, %v365
    %v367 = vrot.slane %v360, %v366
    %v369 = vsel %vm337, %v367, 0.0
    %v370 = vmul.f32 %v369, %v369
    %v372 = vlaneseq
    %v373 = vshrl.u32 %v372, 7
    %v374 = vsub.s32 0, %v373
    %v375 = vrot.slane %v370, %v374
    %v376 = vlaneseq
    %v377 = vshrl.u32 %v376, 7
    %v378 = vsub.s32 1, %v377
    %v379 = vrot.slane %v370, %v378
    %vm382 = vcmask 1040384
    %v383 = vsel %vm382, %v375, 0.0
    %v384 = vsel %vm382, %v379, 0.0
    %v385 = vadd.f32 %v383, %v384
    %386 = vadd.xlane.f32.xlu0 %v385
    %v387 = vpop.xlane.xlu0 %386
    %v388 = vrot.slane %v387, 4
    %v389 = vadd.f32 %v387, %v388
    %v390 = vrot.slane %v389, 2
    %v391 = vadd.f32 %v389, %v390
    %v392 = vrot.slane %v391, 1
    %v393 = vadd.f32 %v391, %v392
    %s394 = vtos %v393
    %v395 = vstv %s394
    %396 = vst [vmem:[#allocation8] sm:$0xff] %v395
    // Predicated region
    $region26: #{tpu_custom_call.1} parent=1 // pred_check
      _
    $region27: #{tpu_custom_call.1} parent=1 // pred_check_branch
      %398 = sbr.rel (0) target = $region29
    $region28: #{tpu_custom_call.1} parent=1 // pred_region
      %s400 = ssub.s32 32, 32
      %401 = vsyncadd [#allocation4], %s400
      %s403 = sshll.u32 [#allocation7], 4
      %s404 = int_to_ptr.vmem [resolvable:$true] %s403
      %406 = dma.vmem_to_hbm [thread:$0]  %s404, 32, %s4, [#allocation4]
    $region29: #{tpu_custom_call.1} parent=1 // pred_fallthru
      _
    // Predicated region
    $region30: #{tpu_custom_call.1} parent=1 // pred_check
      _
    $region31: #{tpu_custom_call.1} parent=1 // pred_check_branch
      %408 = sbr.rel (0) target = $region33
    $region32: #{tpu_custom_call.1} parent=1 // pred_region
      %s410 = ssub.s32 128, 128
      %411 = vsyncadd [#allocation9], %s410
      %s413 = sshll.u32 [#allocation8], 4
      %s414 = int_to_ptr.vmem [resolvable:$true] %s413
      %416 = dma.vmem_to_hbm [thread:$0]  %s414, 128, %s5, [#allocation9]
    $region33: #{tpu_custom_call.1} parent=1 // pred_fallthru
      _
    // Predicated region
    $region34: #{tpu_custom_call.1} parent=1 // pred_check
      _
    $region35: #{tpu_custom_call.1} parent=1 // pred_check_branch
      %418 = sbr.rel (0) target = $region37
    $region36: #{tpu_custom_call.1} parent=1 // pred_region
      %419 = dma.done [#allocation4], 32
    $region37: #{tpu_custom_call.1} parent=1 // pred_fallthru
      _
    // Predicated region
    $region38: #{tpu_custom_call.1} parent=1 // pred_check
      _
    $region39: #{tpu_custom_call.1} parent=1 // pred_check_branch
      %421 = sbr.rel (0) target = $region41
    $region40: #{tpu_custom_call.1} parent=1 // pred_region
      %422 = dma.done [#allocation9], 128
    $region41: #{tpu_custom_call.1} parent=1 // pred_fallthru
      _
    %423 = vsyncpa [#allocation3], 1
    %424 = vsyncpa [#allocation4], 1
    %425 = vsyncpa [#allocation9], 1
    %426 = vsyncpa [#allocation5], 1

</llo_original>
